<compile_context>
chip_gen: v7x
topology: tpu7x:2x2x1
jax: 0.10.0
libtpu: 0.0.40
codegen_flags: <defaults>
</compile_context>

<pallas_src>
import functools

import jax
import jax.numpy as jnp
from jax.experimental import pallas as pl
from jax.experimental.pallas import tpu as pltpu

LN_EPS = 1e-6          # norm_layer = partial(nn.LayerNorm, eps=1e-06)
ADAPTER_SCALE = 0.1    # fixed AdaptFormer-style scaling


def _round_up(x, m):
    return ((x + m - 1) // m) * m


# --------------------------------------------------------------------------
# Generic Pallas kernels (row-tiled, pipelined)
# --------------------------------------------------------------------------
def _linear_kernel(x_ref, w_ref, b_ref, o_ref):
    o_ref[...] = (
        jnp.dot(x_ref[...].astype(jnp.bfloat16), w_ref[...],
                preferred_element_type=jnp.float32)
        + b_ref[...]
    )


def linear(x, w, b, *, tile_m=256):
    """y = x @ w + b with x:(M,K) f32, w:(K,N) bf16, b:(1,N) f32. Row-tiled."""
    M, K = x.shape
    N = w.shape[1]
    tile_m = min(tile_m, _round_up(M, 8))
    M_pad = _round_up(M, tile_m)
    if M_pad != M:
        x = jnp.pad(x, ((0, M_pad - M), (0, 0)))
    out = pl.pallas_call(
        _linear_kernel,
        grid=(M_pad // tile_m,),
        in_specs=[pl.BlockSpec((tile_m, K), lambda i: (i, 0)),
                  pl.BlockSpec((K, N), lambda i: (0, 0)),
                  pl.BlockSpec((1, N), lambda i: (0, 0))],
        out_specs=pl.BlockSpec((tile_m, N), lambda i: (i, 0)),
        out_shape=jax.ShapeDtypeStruct((M_pad, N), jnp.float32),
        compiler_params=pltpu.CompilerParams(dimension_semantics=("parallel",)),
    )(x, w, b)
    return out[:M] if M_pad != M else out


def _layernorm_kernel(x_ref, g_ref, b_ref, o_ref):
    x = x_ref[...]
    mu = jnp.mean(x, axis=-1, keepdims=True)
    var = jnp.mean((x - mu) ** 2, axis=-1, keepdims=True)
    o_ref[...] = (x - mu) * jax.lax.rsqrt(var + LN_EPS) * g_ref[...] + b_ref[...]


def layernorm(x2d, g, b, *, tile_r=512):
    """LayerNorm over last dim of a 2-D array, tiled over rows."""
    R, C = x2d.shape
    tile_r = min(tile_r, _round_up(R, 8))
    R_pad = _round_up(R, tile_r)
    if R_pad != R:
        x2d = jnp.pad(x2d, ((0, R_pad - R), (0, 0)))
    out = pl.pallas_call(
        _layernorm_kernel,
        grid=(R_pad // tile_r,),
        in_specs=[pl.BlockSpec((tile_r, C), lambda i: (i, 0)),
                  pl.BlockSpec((1, C), lambda i: (0, 0)),
                  pl.BlockSpec((1, C), lambda i: (0, 0))],
        out_specs=pl.BlockSpec((tile_r, C), lambda i: (i, 0)),
        out_shape=jax.ShapeDtypeStruct((R_pad, C), jnp.float32),
        compiler_params=pltpu.CompilerParams(dimension_semantics=("parallel",)),
    )(x2d, g, b)
    return out[:R] if R_pad != R else out


# --------------------------------------------------------------------------
# Fused AdapterBlock kernel (one batch element per grid step)
# --------------------------------------------------------------------------
def _block_kernel(num_heads, head_dim,
                  x_ref,
                  ln1_g, ln1_b, qkv_w, qkv_b, proj_w, proj_b,
                  ln2_g, ln2_b, fc1_w, fc1_b, fc2_w, fc2_b,
                  ad_dw, ad_db, ad_uw, ad_ub,
                  o_ref):
    H, Dh = num_heads, head_dim

    def ln(v, g, b):
        mu = jnp.mean(v, axis=-1, keepdims=True)
        var = jnp.mean((v - mu) ** 2, axis=-1, keepdims=True)
        return (v - mu) * jax.lax.rsqrt(var + LN_EPS) * g[...] + b[...]

    x = x_ref[0]                                   # (N, C) f32 activations
    N, C = x.shape

    # --- attention on norm1(x): fused QKV, head-batched score/context ---
    xln = ln(x, ln1_g, ln1_b)
    qkv = (jnp.dot(xln.astype(jnp.bfloat16), qkv_w[...],
                   preferred_element_type=jnp.float32)
           + qkv_b[...])                           # (N, 3C) f32
    # Head split via static slices + stack (no lane-splitting reshape/transpose).
    q_heads, k_heads, v_heads = [], [], []
    for h in range(H):
        q_heads.append(qkv[:, h * Dh:(h + 1) * Dh])
        k_heads.append(qkv[:, C + h * Dh:C + (h + 1) * Dh])
        v_heads.append(qkv[:, 2 * C + h * Dh:2 * C + (h + 1) * Dh])
    q = jnp.stack(q_heads, axis=0).astype(jnp.bfloat16)     # (H, N, Dh)
    k = jnp.stack(k_heads, axis=0).astype(jnp.bfloat16)
    v = jnp.stack(v_heads, axis=0).astype(jnp.bfloat16)

    # attention scale is pre-folded into the Q columns of qkv_w / qkv_b
    s = jnp.einsum('hqd,hkd->hqk', q, k,
                   preferred_element_type=jnp.float32)       # (H, N, N) f32
    s = s - jnp.max(s, axis=-1, keepdims=True)
    p = jnp.exp(s)
    inv = pl.reciprocal(jnp.sum(p, axis=-1, keepdims=True), approx=True)
    ctx = jnp.einsum('hqk,hkd->hqd', p.astype(jnp.bfloat16), v,
                     preferred_element_type=jnp.float32)     # (H, N, Dh) f32
    ctx = ctx * inv                                          # normalize once
    ctx2d = jnp.concatenate([ctx[h] for h in range(H)], axis=-1)  # (N, C)
    attn = (jnp.dot(ctx2d.astype(jnp.bfloat16), proj_w[...],
                    preferred_element_type=jnp.float32)
            + proj_b[...])
    x1 = x + attn                                   # residual 1 (ls1/drop_path = Identity)

    # --- MLP on norm2(x1) ---
    x2 = ln(x1, ln2_g, ln2_b).astype(jnp.bfloat16)
    h1 = (jnp.dot(x2, fc1_w[...], preferred_element_type=jnp.float32)
          + fc1_b[...])
    h1 = jax.nn.gelu(h1, approximate=False).astype(jnp.bfloat16)  # exact GELU
    mlp = (jnp.dot(h1, fc2_w[...], preferred_element_type=jnp.float32)
           + fc2_b[...])

    # --- AdaptFormer parallel adapter on x1 (residual=False) ---
    # bottleneck dim is zero-padded to a multiple of 128 lanes (exact result).
    ad = (jnp.dot(x1.astype(jnp.bfloat16), ad_dw[...],
                  preferred_element_type=jnp.float32) + ad_db[...])
    ad = jnp.maximum(ad, 0.0).astype(jnp.bfloat16)
    ad = (jnp.dot(ad, ad_uw[...], preferred_element_type=jnp.float32)
          + ad_ub[...]) * ADAPTER_SCALE

    # x = x1 + adapt ; x = x + mlp_out
    o_ref[0] = x1 + ad + mlp


def adapter_block(x, p, num_heads, head_dim):
    B, N, C = x.shape
    weights = [p['ln1_g'], p['ln1_b'], p['qkv_w'], p['qkv_b'],
               p['proj_w'], p['proj_b'], p['ln2_g'], p['ln2_b'],
               p['fc1_w'], p['fc1_b'], p['fc2_w'], p['fc2_b'],
               p['ad_dw'], p['ad_db'], p['ad_uw'], p['ad_ub']]

    def const_spec(a):
        return pl.BlockSpec(a.shape, lambda b: (0, 0))   # grid-invariant weight

    in_specs = [pl.BlockSpec((1, N, C), lambda b: (b, 0, 0))]
    in_specs += [const_spec(a) for a in weights]

    # Explicit VMEM budget: resident bf16 weights + double-buffered x/out
    # blocks + f32 activation scratch (qkv, scores, ctx, mlp hidden, adapter).
    hidden = p['fc1_w'].shape[1]
    bneck = p['ad_dw'].shape[1]
    wbytes = sum(int(a.size) * a.dtype.itemsize for a in weights)
    act_elems = (N * 3 * C + num_heads * N * N * 2 + N * C * 6
                 + N * hidden * 2 + N * bneck * 2)
    io_elems = 2 * 2 * N * C
    vmem_limit = int(min(max((wbytes + 4 * (act_elems + io_elems)) * 2,
                             32 * 1024 * 1024), 64 * 1024 * 1024))

    # TODO(synk): for v7x megacore, a second parallel grid axis over query
    # tiles (flash-style) would keep both TCs busy when B is small/odd.
    kernel = functools.partial(_block_kernel, num_heads, head_dim)
    return pl.pallas_call(
        kernel,
        grid=(B,),
        in_specs=in_specs,
        out_specs=pl.BlockSpec((1, N, C), lambda b: (b, 0, 0)),
        out_shape=jax.ShapeDtypeStruct((B, N, C), jnp.float32),
        compiler_params=pltpu.CompilerParams(
            dimension_semantics=("parallel",),
            vmem_limit_bytes=vmem_limit),
    )(x, *weights)


# --------------------------------------------------------------------------
# Parameter init (deterministic, synthetic).  Weights stored bf16 (MXU-native),
# biases / LN params f32 (added after f32 accumulation).
# --------------------------------------------------------------------------
def init_params(key, *, in_chans, patch_size, embed_dim, depth, num_heads,
                mlp_ratio, num_tasks, out_dim_list, num_patches, bottleneck):
    head_dim = embed_dim // num_heads
    hidden = int(embed_dim * mlp_ratio)
    bneck_pad = _round_up(max(bottleneck, 1), 128)
    scale = head_dim ** (-0.5)
    keys = iter(jax.random.split(key, 8192))

    def nrm(shape, s=0.02):
        return jax.random.normal(next(keys), shape, jnp.float32) * s

    def bf(a):
        return a.astype(jnp.bfloat16)

    params = {
        'patch_w': bf(nrm((in_chans * patch_size * patch_size, embed_dim))),
        'patch_b': jnp.zeros((1, embed_dim), jnp.float32),
        'cls_token': jnp.zeros((1, 1, embed_dim), jnp.float32),      # torch.zeros
        'pos_embed': nrm((1, num_patches + 1, embed_dim)),           # randn*0.02
        'norm_g': jnp.ones((1, embed_dim), jnp.float32),
        'norm_b': jnp.zeros((1, embed_dim), jnp.float32),
    }

    blocks = []
    for _ in range(depth):
        # fused QKV weight (C, 3C); fold attention scale into the Q columns
        # (offline weight prep, not an in-kernel / in-wrapper activation scale).
        qkv_w = nrm((embed_dim, 3 * embed_dim))
        qkv_b = nrm((1, 3 * embed_dim))
        col_scale = jnp.concatenate(
            [jnp.full((embed_dim,), scale, jnp.float32),
             jnp.ones((2 * embed_dim,), jnp.float32)], axis=0)
        qkv_w = qkv_w * col_scale[None, :]
        qkv_b = qkv_b * col_scale[None, :]

        bmask = (jnp.arange(bneck_pad) < bottleneck).astype(jnp.float32)
        adapters = [dict(
            ad_dw=bf(nrm((embed_dim, bneck_pad)) * bmask[None, :]),
            ad_db=jnp.zeros((1, bneck_pad), jnp.float32),
            ad_uw=bf(nrm((bneck_pad, embed_dim)) * bmask[:, None]),
            ad_ub=jnp.zeros((1, embed_dim), jnp.float32),
        ) for _ in range(num_tasks)]

        blk = dict(
            ln1_g=jnp.ones((1, embed_dim), jnp.float32),
            ln1_b=jnp.zeros((1, embed_dim), jnp.float32),
            qkv_w=bf(qkv_w),
            qkv_b=qkv_b,
            proj_w=bf(nrm((embed_dim, embed_dim))),
            proj_b=jnp.zeros((1, embed_dim), jnp.float32),
            ln2_g=jnp.ones((1, embed_dim), jnp.float32),
            ln2_b=jnp.zeros((1, embed_dim), jnp.float32),
            fc1_w=bf(nrm((embed_dim, hidden))),
            fc1_b=jnp.zeros((1, hidden), jnp.float32),
            fc2_w=bf(nrm((hidden, embed_dim))),
            fc2_b=jnp.zeros((1, embed_dim), jnp.float32),
            adapters=adapters,
        )
        blocks.append(blk)
    params['blocks'] = blocks
    params['heads'] = [dict(w=bf(nrm((embed_dim, od))),
                            b=jnp.zeros((1, od), jnp.float32))
                       for od in out_dim_list]
    return params


# --------------------------------------------------------------------------
# Forward pass (glue = reshapes / indexing; hot paths = Pallas kernels)
# --------------------------------------------------------------------------
def forward(params, x, task_int, *, patch_size, embed_dim, num_heads):
    B, C, H, W = x.shape
    p = patch_size
    gh, gw = H // p, W // p
    num_patches = gh * gw
    head_dim = embed_dim // num_heads

    # patch_embed: Conv2d(k=p, stride=p) == im2col + tiled Pallas matmul
    patches = (x.reshape(B, C, gh, p, gw, p)
                .transpose(0, 2, 4, 1, 3, 5)            # (B, gh, gw, C, p, p)
                .reshape(B * num_patches, C * p * p))
    tok = linear(patches, params['patch_w'], params['patch_b'])
    tok = tok.reshape(B, num_patches, embed_dim)

    # _pos_embed: prepend cls token, add pos_embed (pos_drop = Identity)
    cls = jnp.broadcast_to(params['cls_token'], (B, 1, embed_dim))
    xseq = jnp.concatenate([cls, tok], axis=1) + params['pos_embed']

    # norm_pre = Identity (pre_norm=False)

    # transformer blocks with per-task adapters
    for blk in params['blocks']:
        merged = {k: v for k, v in blk.items() if k != 'adapters'}
        merged.update(blk['adapters'][task_int])
        xseq = adapter_block(xseq, merged, num_heads, head_dim)

    # final norm (use_fc_norm=False since global_pool='token')
    N = num_patches + 1
    xflat = layernorm(xseq.reshape(B * N, embed_dim),
                      params['norm_g'], params['norm_b'])
    xseq = xflat.reshape(B, N, embed_dim)

    # split_forward_head: token pooling -> fc_norm(Identity) -> task head
    pooled = xseq[:, 0]                                   # (B, C)
    head = params['heads'][task_int]
    return linear(pooled, head['w'], head['b'])


# --------------------------------------------------------------------------
if __name__ == "__main__":
    # small synthetic config
    B = 2
    in_chans = 3
    img_size = 16
    patch_size = 8
    embed_dim = 32
    depth = 2
    num_heads = 4
    mlp_ratio = 4.0
    num_tasks = 2
    out_dim_list = [10, 10]
    bottleneck = 8
    task_int = 1
    num_patches = (img_size // patch_size) ** 2

    key = jax.random.PRNGKey(0)
    kp, kx = jax.random.split(key)
    params = init_params(
        kp, in_chans=in_chans, patch_size=patch_size, embed_dim=embed_dim,
        depth=depth, num_heads=num_heads, mlp_ratio=mlp_ratio,
        num_tasks=num_tasks, out_dim_list=out_dim_list,
        num_patches=num_patches, bottleneck=bottleneck)

    x = jax.random.normal(kx, (B, in_chans, img_size, img_size), jnp.float32)

    out = forward(params, x, task_int,
                  patch_size=patch_size, embed_dim=embed_dim,
                  num_heads=num_heads)
    out = jax.block_until_ready(out)
    assert out.shape == (B, out_dim_list[task_int]), out.shape
    assert jnp.all(jnp.isfinite(out))
    print("KERNEL_OK")
</pallas_src>

<mosaic_0001>
module attributes {stable_mosaic.version = 11 : i64} {
  func.func @_linear_kernel(%arg0: i32, %arg1: memref<8x192xf32, #tpu.memory_space<vmem>>, %arg2: memref<192x32xbf16, #tpu.memory_space<vmem>>, %arg3: memref<1x32xf32, #tpu.memory_space<vmem>>, %arg4: memref<8x32xf32, #tpu.memory_space<vmem>>) attributes {dimension_semantics = [#tpu.dimension_semantics<parallel>], iteration_bounds = array<i64: 1>, scalar_prefetch = 0 : i64, scratch_operands = 0 : i64, tpu.core_type = #tpu.core_type<tc>, window_params = [{transform_indices = @transform_0, window_bounds = array<i64: 8, 192>}, {pipeline_mode = #tpu.pipeline_mode<synchronous>, transform_indices = @transform_1, window_bounds = array<i64: 192, 32>}, {pipeline_mode = #tpu.pipeline_mode<synchronous>, transform_indices = @transform_2, window_bounds = array<i64: 1, 32>}, {transform_indices = @transform_3, window_bounds = array<i64: 8, 32>}]} {
    %c0 = arith.constant 0 : index
    %c0_0 = arith.constant 0 : index
    %0 = vector.load %arg1[%c0, %c0_0] : memref<8x192xf32, #tpu.memory_space<vmem>>, vector<8x192xf32>
    %1 = arith.truncf %0 : vector<8x192xf32> to vector<8x192xbf16>
    %c0_1 = arith.constant 0 : index
    %c0_2 = arith.constant 0 : index
    %2 = vector.load %arg2[%c0_1, %c0_2] : memref<192x32xbf16, #tpu.memory_space<vmem>>, vector<192x32xbf16>
    %cst = arith.constant dense<0.000000e+00> : vector<8x32xf32>
    %3 = tpu.matmul %1, %2, %cst {dimension_numbers = #tpu.dot_dimension_numbers<[1], [0], [0], [1], [0, 0, 1, 1], [], []>} : vector<8x192xbf16>, vector<192x32xbf16>, vector<8x32xf32> -> vector<8x32xf32>
    %c0_3 = arith.constant 0 : index
    %c0_4 = arith.constant 0 : index
    %4 = vector.load %arg3[%c0_3, %c0_4] : memref<1x32xf32, #tpu.memory_space<vmem>>, vector<1x32xf32>
    %5 = vector.broadcast %4 : vector<1x32xf32> to vector<8x32xf32>
    %6 = arith.addf %3, %5 : vector<8x32xf32>
    %c0_5 = arith.constant 0 : index
    %c0_6 = arith.constant 0 : index
    %7 = vector.load %arg4[%c0_5, %c0_6] : memref<8x32xf32, #tpu.memory_space<vmem>>, vector<8x32xf32>
    tpu.vector_store %arg4[%c0_5, %c0_6], %6 {strides = array<i32>} : memref<8x32xf32, #tpu.memory_space<vmem>>, vector<8x32xf32>,
    return
  }
  func.func @transform_0(%arg0: i32) -> (i32, i32) {
    %c0_i32 = arith.constant 0 : i32
    %c0_i32_0 = arith.constant 0 : i32
    return %arg0, %c0_i32 : i32, i32
  }
  func.func @transform_1(%arg0: i32) -> (i32, i32) {
    %c0_i32 = arith.constant 0 : i32
    %c0_i32_0 = arith.constant 0 : i32
    %c0_i32_1 = arith.constant 0 : i32
    return %c0_i32, %c0_i32_0 : i32, i32
  }
  func.func @transform_2(%arg0: i32) -> (i32, i32) {
    %c0_i32 = arith.constant 0 : i32
    %c0_i32_0 = arith.constant 0 : i32
    %c0_i32_1 = arith.constant 0 : i32
    return %c0_i32, %c0_i32_0 : i32, i32
  }
  func.func @transform_3(%arg0: i32) -> (i32, i32) {
    %c0_i32 = arith.constant 0 : i32
    %c0_i32_0 = arith.constant 0 : i32
    return %arg0, %c0_i32 : i32, i32
  }
}

</mosaic_0001>

<llo_original>
// kernel: tpu_custom_call.1
$region0: #{tpu_custom_call.1}
  #allocation0 [shape = 'u32[]', space=smem, size = 0x4, offset = 0x4, fixed_abs, tag = 'smem constant byte address 0x4 - core index']
  #allocation1 [shape = 'u32[144,128]{1,0:T(1,128)}', space=vmem, size = 0x12000, scoped, tag = 'internal scratch']
  %s0 = inlined_call_operand.vmem [shape: f32[8,192], index: 0, kind: input, shape index: {}]
  %s1 = inlined_call_operand.vmem [shape: bf16[192,32], index: 1, kind: input, shape index: {}]
  %s2 = inlined_call_operand.vmem [shape: f32[1,32], index: 2, kind: input, shape index: {}]
  %s3 = inlined_call_operand.hbm [shape: f32[8,32], index: 3, kind: output, shape index: {}]
  %s4 = sld [smem:[#allocation0]]
  $region22: #{tpu_custom_call.1} parent=0
    _
  %s6 = ssub.s32 1, %s4
  %s7 = scalar_select 0, %s6, %s4
  $region1: #{tpu_custom_call.1} parent=0
    #allocation2 [shape = 'u8[4096]{0}', space=vmem, size = 0x1000, scoped, tag = 'output window, operand 0, single buffered']
    #allocation3 [shape = 's32[1]{0}', space=sflag, size = 0x4, scoped, tag = 'scoped memory for tpu_custom_call.1']
    %8 = vsyncpa [#allocation3], 0
    // Predicated region
    $region2: #{tpu_custom_call.1} parent=1 // pred_check
      _
    $region3: #{tpu_custom_call.1} parent=1 // pred_check_branch
      %10 = sbr.rel (0) target = $region5
    $region4: #{tpu_custom_call.1} parent=1 // pred_region
      _
    $region5: #{tpu_custom_call.1} parent=1 // pred_fallthru
      _
    // Predicated region
    $region6: #{tpu_custom_call.1} parent=1 // pred_check
      _
    $region7: #{tpu_custom_call.1} parent=1 // pred_check_branch
      %12 = sbr.rel (0) target = $region9
    $region8: #{tpu_custom_call.1} parent=1 // pred_region
      _
    $region9: #{tpu_custom_call.1} parent=1 // pred_fallthru
      _
    // Predicated region
    $region10: #{tpu_custom_call.1} parent=1 // pred_check
      _
    $region11: #{tpu_custom_call.1} parent=1 // pred_check_branch
      %14 = sbr.rel (0) target = $region13
    $region12: #{tpu_custom_call.1} parent=1 // pred_region
      _
    $region13: #{tpu_custom_call.1} parent=1 // pred_fallthru
      _
    %v16 = vld [vmem:[%s0] sm:$0xff]
    %v17 = vld [vmem:[%s0 + $0x8] sm:$0xff]
    %v18 = vpack.c.bf16 %v16, %v16
    %v19 = vpack.c.bf16 %v17, %v17
    %v20 = vld [vmem:[%s1] sm:$0xf]
    %v21 = vld [vmem:[%s1 + $0x4] sm:$0xf]
    %v22 = vld [vmem:[%s1 + $0x8] sm:$0xf]
    %v23 = vld [vmem:[%s1 + $0xc] sm:$0xf]
    %v24 = vld [vmem:[%s1 + $0x10] sm:$0xf]
    %v25 = vld [vmem:[%s1 + $0x14] sm:$0xf]
    %v26 = vld [vmem:[%s1 + $0x18] sm:$0xf]
    %v27 = vld [vmem:[%s1 + $0x1c] sm:$0xf]
    %v28 = vld [vmem:[%s1 + $0x20] sm:$0xf]
    %v29 = vld [vmem:[%s1 + $0x24] sm:$0xf]
    %v30 = vld [vmem:[%s1 + $0x28] sm:$0xf]
    %v31 = vld [vmem:[%s1 + $0x2c] sm:$0xf]
    %v32 = vld [vmem:[%s1 + $0x30] sm:$0xf]
    %v33 = vld [vmem:[%s1 + $0x34] sm:$0xf]
    %v34 = vld [vmem:[%s1 + $0x38] sm:$0xf]
    %v35 = vld [vmem:[%s1 + $0x3c] sm:$0xf]
    %v36 = vld [vmem:[%s1 + $0x40] sm:$0xf]
    %v37 = vld [vmem:[%s1 + $0x44] sm:$0xf]
    %v38 = vld [vmem:[%s1 + $0x48] sm:$0xf]
    %v39 = vld [vmem:[%s1 + $0x4c] sm:$0xf]
    %v40 = vld [vmem:[%s1 + $0x50] sm:$0xf]
    %v41 = vld [vmem:[%s1 + $0x54] sm:$0xf]
    %v42 = vld [vmem:[%s1 + $0x58] sm:$0xf]
    %v43 = vld [vmem:[%s1 + $0x5c] sm:$0xf]
    %v44 = vld [vmem:[%s2] sm:$0x1]
    %v46 = vlaneseq
    %v47 = vshrl.u32 %v46, 7
    %v48 = vsub.s32 0, %v47
    %v49 = vrot.slane %v44, %v48
    %v75 = vunpack.c.l.b16 %v20
    %v76 = vunpack.c.l.b16 %v21
    %v77 = vunpack.c.l.b16 %v22
    %v78 = vunpack.c.l.b16 %v23
    %v79 = vunpack.c.l.b16 %v24
    %v80 = vunpack.c.l.b16 %v25
    %v81 = vunpack.c.l.b16 %v26
    %v82 = vunpack.c.l.b16 %v27
    %v83 = vunpack.c.l.b16 %v28
    %v84 = vunpack.c.l.b16 %v29
    %v85 = vunpack.c.l.b16 %v30
    %v86 = vunpack.c.l.b16 %v31
    %v87 = vunpack.c.l.b16 %v32
    %v88 = vunpack.c.l.b16 %v33
    %v89 = vunpack.c.l.b16 %v34
    %v90 = vunpack.c.l.b16 %v35
    %v91 = vunpack.c.l.b16 %v36
    %v92 = vunpack.c.l.b16 %v37
    %v93 = vunpack.c.l.b16 %v38
    %v94 = vunpack.c.l.b16 %v39
    %v95 = vunpack.c.l.b16 %v40
    %v96 = vunpack.c.l.b16 %v41
    %v97 = vunpack.c.l.b16 %v42
    %v98 = vunpack.c.l.b16 %v43
    %v99 = vpack.c.b16 %v76, %v75
    %v100 = vpack.c.b16 %v78, %v77
    %v101 = vpack.c.b16 %v80, %v79
    %v102 = vpack.c.b16 %v82, %v81
    %v103 = vpack.c.b16 %v84, %v83
    %v104 = vpack.c.b16 %v86, %v85
    %v105 = vpack.c.b16 %v88, %v87
    %v106 = vpack.c.b16 %v90, %v89
    %v107 = vpack.c.b16 %v92, %v91
    %v108 = vpack.c.b16 %v94, %v93
    %v109 = vpack.c.b16 %v96, %v95
    %v110 = vpack.c.b16 %v98, %v97
    %vm123 = vcmask 523264
    %v125 = vsel %vm123, %v19, 0
    %127 = vmatprep.subr.bf16.mxu0 0
    %128 = vmatpush1.bf16.msra.mxu0 %v99
    %129 = vmatprep.subr.bf16.mxu0 0
    %130 = vmatpush1.bf16.msra.mxu0 %v100
    %131 = vmatprep.subr.bf16.mxu0 0
    %132 = vmatpush1.bf16.msra.mxu0 %v101
    %133 = vmatprep.subr.bf16.mxu0 0
    %134 = vmatpush1.bf16.msra.mxu0 %v102
    %135 = vmatprep.subr.bf16.mxu0 0
    %136 = vmatpush1.bf16.msra.mxu0 %v103
    %137 = vmatprep.subr.bf16.mxu0 0
    %138 = vmatpush1.bf16.msra.mxu0 %v104
    %139 = vmatprep.subr.bf16.mxu0 0
    %140 = vmatpush1.bf16.msra.mxu0 %v105
    %141 = vmatprep.subr.bf16.mxu0 0
    %142 = vmatpush1.bf16.msra.mxu0 %v106
    %143 = vmatprep.subr.bf16.mxu0 0
    %144 = vmatpush1.bf16.msra.mxu0 %v107
    %145 = vmatprep.subr.bf16.mxu0 0
    %146 = vmatpush1.bf16.msra.mxu0 %v108
    %147 = vmatprep.subr.bf16.mxu0 0
    %148 = vmatpush1.bf16.msra.mxu0 %v109
    %149 = vmatprep.subr.bf16.mxu0 0
    %150 = vmatpush1.bf16.msra.mxu0 %v110
    %151 = vmatprep.subr.bf16.mxu0 0
    %152 = vmatpush1.bf16.msra.mxu0 0
    %153 = vmatprep.subr.bf16.mxu0 0
    %154 = vmatpush1.bf16.msra.mxu0 0
    %155 = vmatprep.subr.bf16.mxu0 0
    %156 = vmatpush1.bf16.msra.mxu0 0
    %157 = vmatprep.subr.bf16.mxu0 0
    %158 = vmatpush1.bf16.msra.mxu0 0
    %159 = vmatprep.mubr.bf16.mxu0 %v125
    %160 = vmatmul.mubr.bf16.gmra.mrb[0].mxu0 %v18
    %v161 = vpop.f32.mrb[0].mxu0
    %v162 = vadd.f32 %v49, %v161
    %v163 = vpop.f32.mrb[0].mxu0
    %v164 = vpop.f32.mrb[0].mxu0
    %v165 = vpop.f32.mrb[0].mxu0
    %166 = vdwg.mxu0
    %vm167 = vcmask 261120
    %168 = vst.msk [vmem:[#allocation2] sm:$0xff] %vm167, %v162
    // Predicated region
    $region14: #{tpu_custom_call.1} parent=1 // pred_check
      _
    $region15: #{tpu_custom_call.1} parent=1 // pred_check_branch
      %170 = sbr.rel (0) target = $region17
    $region16: #{tpu_custom_call.1} parent=1 // pred_region
      %s172 = ssub.s32 128, 128
      %173 = vsyncadd [#allocation3], %s172
      %s175 = sshll.u32 [#allocation2], 4
      %s176 = int_to_ptr.vmem [resolvable:$true] %s175
      %178 = dma.vmem_to_hbm [thread:$0]  %s176, 128, %s3, [#allocation3]
    $region17: #{tpu_custom_call.1} parent=1 // pred_fallthru
      _
    // Predicated region
    $region18: #{tpu_custom_call.1} parent=1 // pred_check
      _
    $region19: #{tpu_custom_call.1} parent=1 // pred_check_branch
      %180 = sbr.rel (0) target = $region21
    $region20: #{tpu_custom_call.1} parent=1 // pred_region
      %181 = dma.done [#allocation3], 128
    $region21: #{tpu_custom_call.1} parent=1 // pred_fallthru
      _
    %182 = vsyncpa [#allocation3], 1

</llo_original>
